<compile_context>
chip_gen: v5e
topology: v5e:2x2
jax: 0.10.0
libtpu: 0.0.40
codegen_flags: <defaults>
</compile_context>

<pallas_src>
import math

import jax
import jax.numpy as jnp
import numpy as np
from jax.experimental import pallas as pl
from jax.experimental.pallas import tpu as pltpu


def _round_up(x, m):
    return ((x + m - 1) // m) * m


# ----------------------------------------------------------------------------
# Fused kernel: deconv (as per-row dot) + Linear(1, d1) broadcast + MXU chain
# ----------------------------------------------------------------------------
def _make_fused_decoder_kernel(n_blocks):
    def kernel(xr_ref, wdr_ref, bdr_ref, *rest):
        o_ref = rest[-1]
        wb_refs = rest[:-1]  # [w1, b1, w2, b2, ...]

        # ConvTranspose1d(2, 20, 1, 1) in row-flattened layout:
        #   h[r] = sum_k x[n,k] * wd[k,c] + bd[c],  r = n*20 + c
        # elementwise multiply (VPU) + lane reduce (XLU) -> (TM, 1) column.
        h = jnp.sum(xr_ref[...] * wdr_ref[...], axis=1, keepdims=True)
        h = h + bdr_ref[...]                                   # (TM, 1)

        # Linear(1, d1): K == 1, so do a lane-broadcast mul-add on the VPU
        # instead of pushing a degenerate matmul through the MXU.
        t = h * wb_refs[0][...] + wb_refs[1][...]              # (TM, d1)

        # Remaining Linear layers: MXU matmuls, f32 accumulation, everything
        # (weights + intermediates) stays in VMEM for the whole chain.
        for j in range(1, n_blocks):
            w = wb_refs[2 * j][...]
            b = wb_refs[2 * j + 1][...]
            t = jnp.dot(t, w, preferred_element_type=jnp.float32) + b

        o_ref[...] = t.astype(o_ref.dtype)

    return kernel


# ----------------------------------------------------------------------------
# Parameter construction (deterministic, PyTorch-default-style uniform init)
# ----------------------------------------------------------------------------
def _uniform(key, shape, bound):
    return jax.random.uniform(key, shape, jnp.float32, -bound, bound)


def init_decoder_params(arch, key):
    rev = arch[::-1]                       # self.arch = arch[::-1]
    n_blocks = len(rev) - 1
    keys = jax.random.split(key, 2 + 2 * n_blocks)

    # ConvTranspose1d(2, 20, 1, 1): weight (in=2, out=20, k=1), bias (20,)
    bound = 1.0 / math.sqrt(2 * 1)
    wd = _uniform(keys[0], (2, 20, 1), bound)[:, :, 0]      # -> (2, 20)
    bd = _uniform(keys[1], (1, 20), bound)

    # Linear chain: Linear(rev[0], rev[1]), Linear(rev[1], rev[2]), ...
    blocks = []
    for j, (din, dout) in enumerate(zip(rev[:-1], rev[1:])):
        bound = 1.0 / math.sqrt(din)
        w = _uniform(keys[2 + 2 * j], (dout, din), bound).T  # store as (din, dout)
        b = _uniform(keys[3 + 2 * j], (1, dout), bound)
        blocks.append((jnp.asarray(w), b))
    return {"deconv": (wd, bd), "blocks": blocks}


# ----------------------------------------------------------------------------
# Forward pass: one fused pallas_call
# ----------------------------------------------------------------------------
def decoder_forward(x, params, *, block_rows=256):
    N, c_in, L = x.shape                 # L == arch[::-1][0] == 1
    wd, bd = params["deconv"]            # (2, 20), (1, 20)
    c_out = wd.shape[1]                  # 20
    blocks = params["blocks"]
    n_blocks = len(blocks)
    d_out = blocks[-1][0].shape[1]

    R = N * c_out                        # rows of the flattened problem
    x2 = x[:, :, 0]                      # (N, 2)

    # Row-flattened deconv operands (tiny layout plumbing, R x 2 floats):
    #   row r = n*20 + c  ->  x2[n, :],  wd[:, c],  bd[0, c]
    x_rows = jnp.repeat(x2, c_out, axis=0)                     # (R, 2)
    wd_rows = jnp.tile(wd.T, (N, 1))                           # (R, 2)
    bd_rows = jnp.tile(bd.reshape(c_out, 1), (N, 1))           # (R, 1)

    # Row tiling: pad to a sublane-friendly block, grid over row blocks.
    TM = min(block_rows, _round_up(R, 8))
    R_pad = _round_up(R, TM)
    if R_pad != R:
        pad = R_pad - R
        x_rows = jnp.pad(x_rows, ((0, pad), (0, 0)))
        wd_rows = jnp.pad(wd_rows, ((0, pad), (0, 0)))
        bd_rows = jnp.pad(bd_rows, ((0, pad), (0, 0)))
    grid = (R_pad // TM,)

    in_specs = [
        pl.BlockSpec((TM, c_in), lambda i: (i, 0)),
        pl.BlockSpec((TM, c_in), lambda i: (i, 0)),
        pl.BlockSpec((TM, 1), lambda i: (i, 0)),
    ]
    flat_wb = []
    for w, b in blocks:
        din, dout = w.shape
        in_specs.append(pl.BlockSpec((din, dout), lambda i: (0, 0)))  # resident
        in_specs.append(pl.BlockSpec((1, dout), lambda i: (0, 0)))    # resident
        flat_wb += [w, b]

    # Advisory cost estimate for the XLA scheduler.
    mm_flops = 2 * R_pad * sum(w.shape[0] * w.shape[1] for w, _ in blocks)
    deconv_flops = 2 * R_pad * c_in
    bytes_in = sum(int(a.size) * a.dtype.itemsize
                   for a in (x_rows, wd_rows, bd_rows, *flat_wb))
    cost = pl.CostEstimate(
        flops=int(mm_flops + deconv_flops),
        transcendentals=0,
        bytes_accessed=int(bytes_in + R_pad * d_out * 4),
    )

    out = pl.pallas_call(
        _make_fused_decoder_kernel(n_blocks),
        out_shape=jax.ShapeDtypeStruct((R_pad, d_out), jnp.float32),
        grid=grid,
        in_specs=in_specs,
        out_specs=pl.BlockSpec((TM, d_out), lambda i: (i, 0)),
        compiler_params=pltpu.CompilerParams(
            dimension_semantics=("parallel",)),
        cost_estimate=cost,
    )(x_rows, wd_rows, bd_rows, *flat_wb)

    return out[:R].reshape(N, c_out, d_out)


# ----------------------------------------------------------------------------
# Pure-jnp reference for validation (mirrors the PyTorch forward exactly)
# ----------------------------------------------------------------------------
def decoder_forward_ref(x, params):
    wd, bd = params["deconv"]
    c_out = wd.shape[1]
    # ConvTranspose1d(k=1, s=1): out[n, o, l] = sum_c x[n, c, l] * wd[c, o] + bd[o]
    h = jnp.einsum("ncl,co->nol", x, wd,
                   precision=jax.lax.Precision.HIGHEST) + bd.reshape(1, c_out, 1)
    for w, b in params["blocks"]:
        h = jnp.matmul(h, w, precision=jax.lax.Precision.HIGHEST) + b
    return h


if __name__ == "__main__":
    # Small arch consistent with the module's structure (reversed arch must
    # start at 1, matching the length-1 spatial dim the Linears act on).
    arch = [256, 192, 128, 64, 1]
    N = 2

    key = jax.random.PRNGKey(0)
    k_x, k_p = jax.random.split(key)
    x = jax.random.normal(k_x, (N, 2, 1), dtype=jnp.float32)   # NCL, L = 1
    params = init_decoder_params(arch, k_p)

    out = decoder_forward(x, params)
    out = jax.block_until_ready(out)

    ref = decoder_forward_ref(x, params)
    assert out.shape == (N, 20, arch[0]), out.shape
    np.testing.assert_allclose(np.asarray(out), np.asarray(ref),
                               rtol=2e-5, atol=2e-5)

    print("KERNEL_OK")
</pallas_src>

<mosaic_0001>
module attributes {stable_mosaic.version = 11 : i64} {
  func.func @kernel(%arg0: i32, %arg1: memref<40x2xf32, #tpu.memory_space<vmem>>, %arg2: memref<40x2xf32, #tpu.memory_space<vmem>>, %arg3: memref<40x1xf32, #tpu.memory_space<vmem>>, %arg4: memref<1x64xf32, #tpu.memory_space<vmem>>, %arg5: memref<1x64xf32, #tpu.memory_space<vmem>>, %arg6: memref<64x128xf32, #tpu.memory_space<vmem>>, %arg7: memref<1x128xf32, #tpu.memory_space<vmem>>, %arg8: memref<128x192xf32, #tpu.memory_space<vmem>>, %arg9: memref<1x192xf32, #tpu.memory_space<vmem>>, %arg10: memref<192x256xf32, #tpu.memory_space<vmem>>, %arg11: memref<1x256xf32, #tpu.memory_space<vmem>>, %arg12: memref<40x256xf32, #tpu.memory_space<vmem>>) attributes {dimension_semantics = [#tpu.dimension_semantics<parallel>], iteration_bounds = array<i64: 1>, scalar_prefetch = 0 : i64, scratch_operands = 0 : i64, tpu.core_type = #tpu.core_type<tc>, window_params = [{transform_indices = @transform_0, window_bounds = array<i64: 40, 2>}, {transform_indices = @transform_1, window_bounds = array<i64: 40, 2>}, {transform_indices = @transform_2, window_bounds = array<i64: 40, 1>}, {pipeline_mode = #tpu.pipeline_mode<synchronous>, transform_indices = @transform_3, window_bounds = array<i64: 1, 64>}, {pipeline_mode = #tpu.pipeline_mode<synchronous>, transform_indices = @transform_4, window_bounds = array<i64: 1, 64>}, {pipeline_mode = #tpu.pipeline_mode<synchronous>, transform_indices = @transform_5, window_bounds = array<i64: 64, 128>}, {pipeline_mode = #tpu.pipeline_mode<synchronous>, transform_indices = @transform_6, window_bounds = array<i64: 1, 128>}, {pipeline_mode = #tpu.pipeline_mode<synchronous>, transform_indices = @transform_7, window_bounds = array<i64: 128, 192>}, {pipeline_mode = #tpu.pipeline_mode<synchronous>, transform_indices = @transform_8, window_bounds = array<i64: 1, 192>}, {pipeline_mode = #tpu.pipeline_mode<synchronous>, transform_indices = @transform_9, window_bounds = array<i64: 192, 256>}, {pipeline_mode = #tpu.pipeline_mode<synchronous>, transform_indices = @transform_10, window_bounds = array<i64: 1, 256>}, {transform_indices = @transform_11, window_bounds = array<i64: 40, 256>}]} {
    %c0 = arith.constant 0 : index
    %c0_0 = arith.constant 0 : index
    %0 = vector.load %arg1[%c0, %c0_0] : memref<40x2xf32, #tpu.memory_space<vmem>>, vector<40x2xf32>
    %c0_1 = arith.constant 0 : index
    %c0_2 = arith.constant 0 : index
    %1 = vector.load %arg2[%c0_1, %c0_2] : memref<40x2xf32, #tpu.memory_space<vmem>>, vector<40x2xf32>
    %2 = arith.mulf %0, %1 : vector<40x2xf32>
    %cst = arith.constant dense<0.000000e+00> : vector<40xf32>
    %3 = vector.multi_reduction <add>, %2, %cst [1] : vector<40x2xf32> to vector<40xf32>
    %4 = vector.shape_cast %3 : vector<40xf32> to vector<40x1xf32>
    %c0_3 = arith.constant 0 : index
    %c0_4 = arith.constant 0 : index
    %5 = vector.load %arg3[%c0_3, %c0_4] : memref<40x1xf32, #tpu.memory_space<vmem>>, vector<40x1xf32>
    %6 = arith.addf %4, %5 : vector<40x1xf32>
    %c0_5 = arith.constant 0 : index
    %c0_6 = arith.constant 0 : index
    %7 = vector.load %arg4[%c0_5, %c0_6] : memref<1x64xf32, #tpu.memory_space<vmem>>, vector<1x64xf32>
    %8 = vector.broadcast %6 : vector<40x1xf32> to vector<40x64xf32>
    %9 = vector.broadcast %7 : vector<1x64xf32> to vector<40x64xf32>
    %10 = arith.mulf %8, %9 : vector<40x64xf32>
    %c0_7 = arith.constant 0 : index
    %c0_8 = arith.constant 0 : index
    %11 = vector.load %arg5[%c0_7, %c0_8] : memref<1x64xf32, #tpu.memory_space<vmem>>, vector<1x64xf32>
    %12 = vector.broadcast %11 : vector<1x64xf32> to vector<40x64xf32>
    %13 = arith.addf %10, %12 : vector<40x64xf32>
    %c0_9 = arith.constant 0 : index
    %c0_10 = arith.constant 0 : index
    %14 = vector.load %arg6[%c0_9, %c0_10] : memref<64x128xf32, #tpu.memory_space<vmem>>, vector<64x128xf32>
    %c0_11 = arith.constant 0 : index
    %c0_12 = arith.constant 0 : index
    %15 = vector.load %arg7[%c0_11, %c0_12] : memref<1x128xf32, #tpu.memory_space<vmem>>, vector<1x128xf32>
    %cst_13 = arith.constant dense<0.000000e+00> : vector<40x128xf32>
    %16 = tpu.matmul %13, %14, %cst_13 {dimension_numbers = #tpu.dot_dimension_numbers<[1], [0], [0], [1], [0, 0, 1, 1], [], []>} : vector<40x64xf32>, vector<64x128xf32>, vector<40x128xf32> -> vector<40x128xf32>
    %17 = vector.broadcast %15 : vector<1x128xf32> to vector<40x128xf32>
    %18 = arith.addf %16, %17 : vector<40x128xf32>
    %c0_14 = arith.constant 0 : index
    %c0_15 = arith.constant 0 : index
    %19 = vector.load %arg8[%c0_14, %c0_15] : memref<128x192xf32, #tpu.memory_space<vmem>>, vector<128x192xf32>
    %c0_16 = arith.constant 0 : index
    %c0_17 = arith.constant 0 : index
    %20 = vector.load %arg9[%c0_16, %c0_17] : memref<1x192xf32, #tpu.memory_space<vmem>>, vector<1x192xf32>
    %cst_18 = arith.constant dense<0.000000e+00> : vector<40x192xf32>
    %21 = tpu.matmul %18, %19, %cst_18 {dimension_numbers = #tpu.dot_dimension_numbers<[1], [0], [0], [1], [0, 0, 1, 1], [], []>} : vector<40x128xf32>, vector<128x192xf32>, vector<40x192xf32> -> vector<40x192xf32>
    %22 = vector.broadcast %20 : vector<1x192xf32> to vector<40x192xf32>
    %23 = arith.addf %21, %22 : vector<40x192xf32>
    %c0_19 = arith.constant 0 : index
    %c0_20 = arith.constant 0 : index
    %24 = vector.load %arg10[%c0_19, %c0_20] : memref<192x256xf32, #tpu.memory_space<vmem>>, vector<192x256xf32>
    %c0_21 = arith.constant 0 : index
    %c0_22 = arith.constant 0 : index
    %25 = vector.load %arg11[%c0_21, %c0_22] : memref<1x256xf32, #tpu.memory_space<vmem>>, vector<1x256xf32>
    %cst_23 = arith.constant dense<0.000000e+00> : vector<40x256xf32>
    %26 = tpu.matmul %23, %24, %cst_23 {dimension_numbers = #tpu.dot_dimension_numbers<[1], [0], [0], [1], [0, 0, 1, 1], [], []>} : vector<40x192xf32>, vector<192x256xf32>, vector<40x256xf32> -> vector<40x256xf32>
    %27 = vector.broadcast %25 : vector<1x256xf32> to vector<40x256xf32>
    %28 = arith.addf %26, %27 : vector<40x256xf32>
    %c0_24 = arith.constant 0 : index
    %c0_25 = arith.constant 0 : index
    %29 = vector.load %arg12[%c0_24, %c0_25] : memref<40x256xf32, #tpu.memory_space<vmem>>, vector<40x256xf32>
    tpu.vector_store %arg12[%c0_24, %c0_25], %28 {strides = array<i32>} : memref<40x256xf32, #tpu.memory_space<vmem>>, vector<40x256xf32>,
    return
  }
  func.func @transform_0(%arg0: i32) -> (i32, i32) {
    %c0_i32 = arith.constant 0 : i32
    %c0_i32_0 = arith.constant 0 : i32
    return %arg0, %c0_i32 : i32, i32
  }
  func.func @transform_1(%arg0: i32) -> (i32, i32) {
    %c0_i32 = arith.constant 0 : i32
    %c0_i32_0 = arith.constant 0 : i32
    return %arg0, %c0_i32 : i32, i32
  }
  func.func @transform_2(%arg0: i32) -> (i32, i32) {
    %c0_i32 = arith.constant 0 : i32
    %c0_i32_0 = arith.constant 0 : i32
    return %arg0, %c0_i32 : i32, i32
  }
  func.func @transform_3(%arg0: i32) -> (i32, i32) {
    %c0_i32 = arith.constant 0 : i32
    %c0_i32_0 = arith.constant 0 : i32
    %c0_i32_1 = arith.constant 0 : i32
    return %c0_i32, %c0_i32_0 : i32, i32
  }
  func.func @transform_4(%arg0: i32) -> (i32, i32) {
    %c0_i32 = arith.constant 0 : i32
    %c0_i32_0 = arith.constant 0 : i32
    %c0_i32_1 = arith.constant 0 : i32
    return %c0_i32, %c0_i32_0 : i32, i32
  }
  func.func @transform_5(%arg0: i32) -> (i32, i32) {
    %c0_i32 = arith.constant 0 : i32
    %c0_i32_0 = arith.constant 0 : i32
    %c0_i32_1 = arith.constant 0 : i32
    return %c0_i32, %c0_i32_0 : i32, i32
  }
  func.func @transform_6(%arg0: i32) -> (i32, i32) {
    %c0_i32 = arith.constant 0 : i32
    %c0_i32_0 = arith.constant 0 : i32
    %c0_i32_1 = arith.constant 0 : i32
    return %c0_i32, %c0_i32_0 : i32, i32
  }
  func.func @transform_7(%arg0: i32) -> (i32, i32) {
    %c0_i32 = arith.constant 0 : i32
    %c0_i32_0 = arith.constant 0 : i32
    %c0_i32_1 = arith.constant 0 : i32
    return %c0_i32, %c0_i32_0 : i32, i32
  }
  func.func @transform_8(%arg0: i32) -> (i32, i32) {
    %c0_i32 = arith.constant 0 : i32
    %c0_i32_0 = arith.constant 0 : i32
    %c0_i32_1 = arith.constant 0 : i32
    return %c0_i32, %c0_i32_0 : i32, i32
  }
  func.func @transform_9(%arg0: i32) -> (i32, i32) {
    %c0_i32 = arith.constant 0 : i32
    %c0_i32_0 = arith.constant 0 : i32
    %c0_i32_1 = arith.constant 0 : i32
    return %c0_i32, %c0_i32_0 : i32, i32
  }
  func.func @transform_10(%arg0: i32) -> (i32, i32) {
    %c0_i32 = arith.constant 0 : i32
    %c0_i32_0 = arith.constant 0 : i32
    %c0_i32_1 = arith.constant 0 : i32
    return %c0_i32, %c0_i32_0 : i32, i32
  }
  func.func @transform_11(%arg0: i32) -> (i32, i32) {
    %c0_i32 = arith.constant 0 : i32
    %c0_i32_0 = arith.constant 0 : i32
    return %arg0, %c0_i32 : i32, i32
  }
}

</mosaic_0001>

<llo_original>
// kernel: tpu_custom_call.1
$region0: #{tpu_custom_call.1}
  #allocation0 [shape = 'u32[]', space=smem, size = 0x4, offset = 0x4, fixed_abs, tag = 'smem constant byte address 0x4 - core index']
  #allocation1 [shape = 'u32[72,128]{1,0:T(1,128)}', space=vmem, size = 0x9000, scoped, tag = 'internal scratch']
  %s0 = inlined_call_operand.vmem [shape: f32[40,2], index: 0, kind: input, shape index: {}]
  %s1 = inlined_call_operand.vmem [shape: f32[40,2], index: 1, kind: input, shape index: {}]
  %s2 = inlined_call_operand.vmem [shape: f32[40,1], index: 2, kind: input, shape index: {}]
  %s3 = inlined_call_operand.vmem [shape: f32[1,64], index: 3, kind: input, shape index: {}]
  %s4 = inlined_call_operand.vmem [shape: f32[1,64], index: 4, kind: input, shape index: {}]
  %s5 = inlined_call_operand.vmem [shape: f32[64,128], index: 5, kind: input, shape index: {}]
  %s6 = inlined_call_operand.vmem [shape: f32[1,128], index: 6, kind: input, shape index: {}]
  %s7 = inlined_call_operand.vmem [shape: f32[128,192], index: 7, kind: input, shape index: {}]
  %s8 = inlined_call_operand.vmem [shape: f32[1,192], index: 8, kind: input, shape index: {}]
  %s9 = inlined_call_operand.vmem [shape: f32[192,256], index: 9, kind: input, shape index: {}]
  %s10 = inlined_call_operand.vmem [shape: f32[1,256], index: 10, kind: input, shape index: {}]
  %s11 = inlined_call_operand.hbm [shape: f32[40,256], index: 11, kind: output, shape index: {}]
  %s12 = sld [smem:[#allocation0]]
  $region54: #{tpu_custom_call.1} parent=0
    _
  %s14 = ssub.s32 1, %s12
  %s15 = scalar_select 0, %s14, %s12
  $region1: #{tpu_custom_call.1} parent=0
    #allocation2 [shape = 'u8[40960]{0}', space=vmem, size = 0xa000, scoped, tag = 'output window, operand 0, single buffered']
    #allocation3 [shape = 's32[1]{0}', space=sflag, size = 0x4, scoped, tag = 'scoped memory for tpu_custom_call.1']
    %16 = vsyncpa [#allocation3], 0
    // Predicated region
    $region2: #{tpu_custom_call.1} parent=1 // pred_check
      _
    $region3: #{tpu_custom_call.1} parent=1 // pred_check_branch
      %18 = sbr.rel (0) target = $region5
    $region4: #{tpu_custom_call.1} parent=1 // pred_region
      _
    $region5: #{tpu_custom_call.1} parent=1 // pred_fallthru
      _
    // Predicated region
    $region6: #{tpu_custom_call.1} parent=1 // pred_check
      _
    $region7: #{tpu_custom_call.1} parent=1 // pred_check_branch
      %20 = sbr.rel (0) target = $region9
    $region8: #{tpu_custom_call.1} parent=1 // pred_region
      _
    $region9: #{tpu_custom_call.1} parent=1 // pred_fallthru
      _
    // Predicated region
    $region10: #{tpu_custom_call.1} parent=1 // pred_check
      _
    $region11: #{tpu_custom_call.1} parent=1 // pred_check_branch
      %22 = sbr.rel (0) target = $region13
    $region12: #{tpu_custom_call.1} parent=1 // pred_region
      _
    $region13: #{tpu_custom_call.1} parent=1 // pred_fallthru
      _
    // Predicated region
    $region14: #{tpu_custom_call.1} parent=1 // pred_check
      _
    $region15: #{tpu_custom_call.1} parent=1 // pred_check_branch
      %24 = sbr.rel (0) target = $region17
    $region16: #{tpu_custom_call.1} parent=1 // pred_region
      _
    $region17: #{tpu_custom_call.1} parent=1 // pred_fallthru
      _
    // Predicated region
    $region18: #{tpu_custom_call.1} parent=1 // pred_check
      _
    $region19: #{tpu_custom_call.1} parent=1 // pred_check_branch
      %26 = sbr.rel (0) target = $region21
    $region20: #{tpu_custom_call.1} parent=1 // pred_region
      _
    $region21: #{tpu_custom_call.1} parent=1 // pred_fallthru
      _
    // Predicated region
    $region22: #{tpu_custom_call.1} parent=1 // pred_check
      _
    $region23: #{tpu_custom_call.1} parent=1 // pred_check_branch
      %28 = sbr.rel (0) target = $region25
    $region24: #{tpu_custom_call.1} parent=1 // pred_region
      _
    $region25: #{tpu_custom_call.1} parent=1 // pred_fallthru
      _
    // Predicated region
    $region26: #{tpu_custom_call.1} parent=1 // pred_check
      _
    $region27: #{tpu_custom_call.1} parent=1 // pred_check_branch
      %30 = sbr.rel (0) target = $region29
    $region28: #{tpu_custom_call.1} parent=1 // pred_region
      _
    $region29: #{tpu_custom_call.1} parent=1 // pred_fallthru
      _
    // Predicated region
    $region30: #{tpu_custom_call.1} parent=1 // pred_check
      _
    $region31: #{tpu_custom_call.1} parent=1 // pred_check_branch
      %32 = sbr.rel (0) target = $region33
    $region32: #{tpu_custom_call.1} parent=1 // pred_region
      _
    $region33: #{tpu_custom_call.1} parent=1 // pred_fallthru
      _
    // Predicated region
    $region34: #{tpu_custom_call.1} parent=1 // pred_check
      _
    $region35: #{tpu_custom_call.1} parent=1 // pred_check_branch
      %34 = sbr.rel (0) target = $region37
    $region36: #{tpu_custom_call.1} parent=1 // pred_region
      _
    $region37: #{tpu_custom_call.1} parent=1 // pred_fallthru
      _
    // Predicated region
    $region38: #{tpu_custom_call.1} parent=1 // pred_check
      _
    $region39: #{tpu_custom_call.1} parent=1 // pred_check_branch
      %36 = sbr.rel (0) target = $region41
    $region40: #{tpu_custom_call.1} parent=1 // pred_region
      _
    $region41: #{tpu_custom_call.1} parent=1 // pred_fallthru
      _
    // Predicated region
    $region42: #{tpu_custom_call.1} parent=1 // pred_check
      _
    $region43: #{tpu_custom_call.1} parent=1 // pred_check_branch
      %38 = sbr.rel (0) target = $region45
    $region44: #{tpu_custom_call.1} parent=1 // pred_region
      _
    $region45: #{tpu_custom_call.1} parent=1 // pred_fallthru
      _
    %v39 = vld [vmem:[%s0] sm:$0xff]
    %v40 = vld [vmem:[%s0 + $0x8] sm:$0xff]
    %v41 = vld [vmem:[%s0 + $0x10] sm:$0xff]
    %v42 = vld [vmem:[%s0 + $0x18] sm:$0xff]
    %v43 = vld [vmem:[%s0 + $0x20] sm:$0xff]
    %v44 = vld [vmem:[%s1] sm:$0xff]
    %v45 = vld [vmem:[%s1 + $0x8] sm:$0xff]
    %v46 = vld [vmem:[%s1 + $0x10] sm:$0xff]
    %v47 = vld [vmem:[%s1 + $0x18] sm:$0xff]
    %v48 = vld [vmem:[%s1 + $0x20] sm:$0xff]
    %v49 = vmul.f32 %v39, %v44
    %v50 = vmul.f32 %v40, %v45
    %v51 = vmul.f32 %v41, %v46
    %v52 = vmul.f32 %v42, %v47
    %v53 = vmul.f32 %v43, %v48
    %vm54 = vcmask 15360
    %v55 = vsel %vm54, %v49, 0.0
    %56 = vadd.xlane.f32.xlu0 %v55
    %v57 = vpop.xlane.xlu0 %56
    %v58 = vsel %vm54, %v50, 0.0
    %59 = vadd.xlane.f32.xlu0 %v58
    %v60 = vpop.xlane.xlu0 %59
    %v61 = vsel %vm54, %v51, 0.0
    %62 = vadd.xlane.f32.xlu0 %v61
    %v63 = vpop.xlane.xlu0 %62
    %v64 = vsel %vm54, %v52, 0.0
    %65 = vadd.xlane.f32.xlu0 %v64
    %v66 = vpop.xlane.xlu0 %65
    %v67 = vsel %vm54, %v53, 0.0
    %68 = vadd.xlane.f32.xlu0 %v67
    %v69 = vpop.xlane.xlu0 %68
    %v70 = vld [vmem:[%s2] sm:$0xff]
    %v71 = vld [vmem:[%s2 + $0x8] sm:$0xff]
    %v72 = vld [vmem:[%s2 + $0x10] sm:$0xff]
    %v73 = vld [vmem:[%s2 + $0x18] sm:$0xff]
    %v74 = vld [vmem:[%s2 + $0x20] sm:$0xff]
    %v75 = vadd.f32 %v57, %v70
    %v76 = vadd.f32 %v60, %v71
    %v77 = vadd.f32 %v63, %v72
    %v78 = vadd.f32 %v66, %v73
    %v79 = vadd.f32 %v69, %v74
    %v80 = vld [vmem:[%s3] sm:$0x1]
    %82 = vset.pattern.permute.xlu0 0
    %83 = vperm.xlu0 %82, %v75
    %v84 = vpop.permute.xlu0 %83
    %87 = vset.pattern.permute.xlu0 0
    %88 = vperm.xlu0 %87, %v76
    %v89 = vpop.permute.xlu0 %88
    %92 = vset.pattern.permute.xlu0 0
    %93 = vperm.xlu0 %92, %v77
    %v94 = vpop.permute.xlu0 %93
    %97 = vset.pattern.permute.xlu0 0
    %98 = vperm.xlu0 %97, %v78
    %v99 = vpop.permute.xlu0 %98
    %102 = vset.pattern.permute.xlu0 0
    %103 = vperm.xlu0 %102, %v79
    %v104 = vpop.permute.xlu0 %103
    %v107 = vperm.slane %v80, 0
    %v109 = vmul.f32 %v84, %v107
    %v110 = vmul.f32 %v89, %v107
    %v111 = vmul.f32 %v94, %v107
    %v112 = vmul.f32 %v99, %v107
    %v113 = vmul.f32 %v104, %v107
    %v114 = vld [vmem:[%s4] sm:$0x1]
    %v116 = vperm.slane %v114, 0
    %v118 = vadd.f32 %v109, %v116
    %v119 = vadd.f32 %v110, %v116
    %v120 = vadd.f32 %v111, %v116
    %v121 = vadd.f32 %v112, %v116
    %v122 = vadd.f32 %v113, %v116
    %v123 = vld [vmem:[%s5] sm:$0xff]
    %v124 = vld [vmem:[%s5 + $0x8] sm:$0xff]
    %v125 = vld [vmem:[%s5 + $0x10] sm:$0xff]
    %v126 = vld [vmem:[%s5 + $0x18] sm:$0xff]
    %v127 = vld [vmem:[%s5 + $0x20] sm:$0xff]
    %v128 = vld [vmem:[%s5 + $0x28] sm:$0xff]
    %v129 = vld [vmem:[%s5 + $0x30] sm:$0xff]
    %v130 = vld [vmem:[%s5 + $0x38] sm:$0xff]
    %v131 = vld [vmem:[%s6] sm:$0x1]
    %v133 = vperm.slane %v131, 0
    %vm135 = vcmask 523264
    %v137 = vsel %vm135, %v118, 0
    %v140 = vsel %vm135, %v119, 0
    %v143 = vsel %vm135, %v120, 0
    %v146 = vsel %vm135, %v121, 0
    %v149 = vsel %vm135, %v122, 0
    %151 = vmatpush.msra.mxu0 0.0
    %152 = vmatpush.msra.mxu0 0.0
    %153 = vmatpush.msra.mxu0 0.0
    %154 = vmatpush.msra.mxu0 0.0
    %155 = vmatpush.msra.mxu0 0.0
    %156 = vmatpush.msra.mxu0 0.0
    %157 = vmatpush.msra.mxu0 0.0
    %158 = vmatpush.msra.mxu0 0.0
    %159 = vmatpush.msra.mxu0 %v130
    %160 = vmatpush.msra.mxu0 %v129
    %161 = vmatpush.msra.mxu0 %v128
    %162 = vmatpush.msra.mxu0 %v127
    %163 = vmatpush.msra.mxu0 %v126
    %164 = vmatpush.msra.mxu0 %v125
    %165 = vmatpush.msra.mxu0 %v124
    %166 = vmatpush.msra.mxu0 %v123
    %167 = vmatmul.f32.gmra.mxu0 %v137
    %v168 = vpop.f32.mrf.mxu0
    %v169 = vadd.f32 %v133, %v168
    %170 = vmatmul.f32.gmra.mxu0 %v140
    %v171 = vpop.f32.mrf.mxu0
    %v172 = vadd.f32 %v133, %v171
    %173 = vmatmul.f32.gmra.mxu0 %v143
    %v174 = vpop.f32.mrf.mxu0
    %v175 = vadd.f32 %v133, %v174
    %176 = vmatmul.f32.gmra.mxu0 %v146
    %v177 = vpop.f32.mrf.mxu0
    %v178 = vadd.f32 %v133, %v177
    %179 = vmatmul.f32.gmra.mxu0 %v149
    %v180 = vpop.f32.mrf.mxu0
    %v181 = vadd.f32 %v133, %v180
    %182 = vdwg.mxu0
    %v183 = vld [vmem:[%s7] sm:$0xff]
    %v184 = vld [vmem:[%s7 + $0x8] sm:$0xff]
    %v185 = vld [vmem:[%s7 + $0x10] sm:$0xff]
    %v186 = vld [vmem:[%s7 + $0x18] sm:$0xff]
    %v187 = vld [vmem:[%s7 + $0x20] sm:$0xff]
    %v188 = vld [vmem:[%s7 + $0x28] sm:$0xff]
    %v189 = vld [vmem:[%s7 + $0x30] sm:$0xff]
    %v190 = vld [vmem:[%s7 + $0x38] sm:$0xff]
    %v191 = vld [vmem:[%s7 + $0x40] sm:$0xff]
    %v192 = vld [vmem:[%s7 + $0x48] sm:$0xff]
    %v193 = vld [vmem:[%s7 + $0x50] sm:$0xff]
    %v194 = vld [vmem:[%s7 + $0x58] sm:$0xff]
    %v195 = vld [vmem:[%s7 + $0x60] sm:$0xff]
    %v196 = vld [vmem:[%s7 + $0x68] sm:$0xff]
    %v197 = vld [vmem:[%s7 + $0x70] sm:$0xff]
    %v198 = vld [vmem:[%s7 + $0x78] sm:$0xff]
    %v199 = vld [vmem:[%s7 + $0x80] sm:$0xff]
    %v200 = vld [vmem:[%s7 + $0x88] sm:$0xff]
    %v201 = vld [vmem:[%s7 + $0x90] sm:$0xff]
    %v202 = vld [vmem:[%s7 + $0x98] sm:$0xff]
    %v203 = vld [vmem:[%s7 + $0xa0] sm:$0xff]
    %v204 = vld [vmem:[%s7 + $0xa8] sm:$0xff]
    %v205 = vld [vmem:[%s7 + $0xb0] sm:$0xff]
    %v206 = vld [vmem:[%s7 + $0xb8] sm:$0xff]
    %v207 = vld [vmem:[%s7 + $0xc0] sm:$0xff]
    %v208 = vld [vmem:[%s7 + $0xc8] sm:$0xff]
    %v209 = vld [vmem:[%s7 + $0xd0] sm:$0xff]
    %v210 = vld [vmem:[%s7 + $0xd8] sm:$0xff]
    %v211 = vld [vmem:[%s7 + $0xe0] sm:$0xff]
    %v212 = vld [vmem:[%s7 + $0xe8] sm:$0xff]
    %v213 = vld [vmem:[%s7 + $0xf0] sm:$0xff]
    %v214 = vld [vmem:[%s7 + $0xf8] sm:$0xff]
    %v215 = vld [vmem:[%s8] sm:$0x3]
    %v217 = vperm.slane %v215, 0
    %v218 = vperm.slane %v215, 1
    %221 = vmatpush.msra.mxu0 %v213
    %222 = vmatpush.msra.mxu0 %v211
    %223 = vmatpush.msra.mxu0 %v209
    %224 = vmatpush.msra.mxu0 %v207
    %225 = vmatpush.msra.mxu0 %v205
    %226 = vmatpush.msra.mxu0 %v203
    %227 = vmatpush.msra.mxu0 %v201
    %228 = vmatpush.msra.mxu0 %v199
    %229 = vmatpush.msra.mxu0 %v197
    %230 = vmatpush.msra.mxu0 %v195
    %231 = vmatpush.msra.mxu0 %v193
    %232 = vmatpush.msra.mxu0 %v191
    %233 = vmatpush.msra.mxu0 %v189
    %234 = vmatpush.msra.mxu0 %v187
    %235 = vmatpush.msra.mxu0 %v185
    %236 = vmatpush.msra.mxu0 %v183
    %237 = vmatmul.f32.gmra.mxu0 %v169
    %v238 = vpop.f32.mrf.mxu0
    %v239 = vadd.f32 %v217, %v238
    %240 = vmatmul.f32.gmra.mxu0 %v172
    %v241 = vpop.f32.mrf.mxu0
    %v242 = vadd.f32 %v217, %v241
    %243 = vmatmul.f32.gmra.mxu0 %v175
    %v244 = vpop.f32.mrf.mxu0
    %v245 = vadd.f32 %v217, %v244
    %246 = vmatmul.f32.gmra.mxu0 %v178
    %v247 = vpop.f32.mrf.mxu0
    %v248 = vadd.f32 %v217, %v247
    %249 = vmatmul.f32.gmra.mxu0 %v181
    %v250 = vpop.f32.mrf.mxu0
    %v251 = vadd.f32 %v217, %v250
    %252 = vdwg.mxu0
    %253 = vmatpush.msra.mxu0 %v214
    %254 = vmatpush.msra.mxu0 %v212
    %255 = vmatpush.msra.mxu0 %v210
    %256 = vmatpush.msra.mxu0 %v208
    %257 = vmatpush.msra.mxu0 %v206
    %258 = vmatpush.msra.mxu0 %v204
    %259 = vmatpush.msra.mxu0 %v202
    %260 = vmatpush.msra.mxu0 %v200
    %261 = vmatpush.msra.mxu0 %v198
    %262 = vmatpush.msra.mxu0 %v196
    %263 = vmatpush.msra.mxu0 %v194
    %264 = vmatpush.msra.mxu0 %v192
    %265 = vmatpush.msra.mxu0 %v190
    %266 = vmatpush.msra.mxu0 %v188
    %267 = vmatpush.msra.mxu0 %v186
    %268 = vmatpush.msra.mxu0 %v184
    %269 = vmatmul.f32.gmra.mxu0 %v169
    %v270 = vpop.f32.mrf.mxu0
    %v271 = vadd.f32 %v218, %v270
    %272 = vmatmul.f32.gmra.mxu0 %v172
    %v273 = vpop.f32.mrf.mxu0
    %v274 = vadd.f32 %v218, %v273
    %275 = vmatmul.f32.gmra.mxu0 %v175
    %v276 = vpop.f32.mrf.mxu0
    %v277 = vadd.f32 %v218, %v276
    %278 = vmatmul.f32.gmra.mxu0 %v178
    %v279 = vpop.f32.mrf.mxu0
    %v280 = vadd.f32 %v218, %v279
    %281 = vmatmul.f32.gmra.mxu0 %v181
    %v282 = vpop.f32.mrf.mxu0
    %v283 = vadd.f32 %v218, %v282
    %284 = vdwg.mxu0
    %v285 = vld [vmem:[%s9] sm:$0xff]
    %v286 = vld [vmem:[%s9 + $0x8] sm:$0xff]
    %v287 = vld [vmem:[%s9 + $0x10] sm:$0xff]
    %v288 = vld [vmem:[%s9 + $0x18] sm:$0xff]
    %v289 = vld [vmem:[%s9 + $0x20] sm:$0xff]
    %v290 = vld [vmem:[%s9 + $0x28] sm:$0xff]
    %v291 = vld [vmem:[%s9 + $0x30] sm:$0xff]
    %v292 = vld [vmem:[%s9 + $0x38] sm:$0xff]
    %v293 = vld [vmem:[%s9 + $0x40] sm:$0xff]
    %v294 = vld [vmem:[%s9 + $0x48] sm:$0xff]
    %v295 = vld [vmem:[%s9 + $0x50] sm:$0xff]
    %v296 = vld [vmem:[%s9 + $0x58] sm:$0xff]
    %v297 = vld [vmem:[%s9 + $0x60] sm:$0xff]
    %v298 = vld [vmem:[%s9 + $0x68] sm:$0xff]
    %v299 = vld [vmem:[%s9 + $0x70] sm:$0xff]
    %v300 = vld [vmem:[%s9 + $0x78] sm:$0xff]
    %v301 = vld [vmem:[%s9 + $0x80] sm:$0xff]
    %v302 = vld [vmem:[%s9 + $0x88] sm:$0xff]
    %v303 = vld [vmem:[%s9 + $0x90] sm:$0xff]
    %v304 = vld [vmem:[%s9 + $0x98] sm:$0xff]
    %v305 = vld [vmem:[%s9 + $0xa0] sm:$0xff]
    %v306 = vld [vmem:[%s9 + $0xa8] sm:$0xff]
    %v307 = vld [vmem:[%s9 + $0xb0] sm:$0xff]
    %v308 = vld [vmem:[%s9 + $0xb8] sm:$0xff]
    %v309 = vld [vmem:[%s9 + $0xc0] sm:$0xff]
    %v310 = vld [vmem:[%s9 + $0xc8] sm:$0xff]
    %v311 = vld [vmem:[%s9 + $0xd0] sm:$0xff]
    %v312 = vld [vmem:[%s9 + $0xd8] sm:$0xff]
    %v313 = vld [vmem:[%s9 + $0xe0] sm:$0xff]
    %v314 = vld [vmem:[%s9 + $0xe8] sm:$0xff]
    %v315 = vld [vmem:[%s9 + $0xf0] sm:$0xff]
    %v316 = vld [vmem:[%s9 + $0xf8] sm:$0xff]
    %v317 = vld [vmem:[%s9 + $0x100] sm:$0xff]
    %v318 = vld [vmem:[%s9 + $0x108] sm:$0xff]
    %v319 = vld [vmem:[%s9 + $0x110] sm:$0xff]
    %v320 = vld [vmem:[%s9 + $0x118] sm:$0xff]
    %v321 = vld [vmem:[%s9 + $0x120] sm:$0xff]
    %v322 = vld [vmem:[%s9 + $0x128] sm:$0xff]
    %v323 = vld [vmem:[%s9 + $0x130] sm:$0xff]
    %v324 = vld [vmem:[%s9 + $0x138] sm:$0xff]
    %v325 = vld [vmem:[%s9 + $0x140] sm:$0xff]
    %v326 = vld [vmem:[%s9 + $0x148] sm:$0xff]
    %v327 = vld [vmem:[%s9 + $0x150] sm:$0xff]
    %v328 = vld [vmem:[%s9 + $0x158] sm:$0xff]
    %v329 = vld [vmem:[%s9 + $0x160] sm:$0xff]
    %v330 = vld [vmem:[%s9 + $0x168] sm:$0xff]
    %v331 = vld [vmem:[%s9 + $0x170] sm:$0xff]
    %v332 = vld [vmem:[%s9 + $0x178] sm:$0xff]
    %v333 = vld [vmem:[%s10] sm:$0x3]
    %v335 = vperm.slane %v333, 0
    %v336 = vperm.slane %v333, 1
    %v340 = vsel %vm135, %v271, 0
    %v343 = vsel %vm135, %v274, 0
    %v346 = vsel %vm135, %v277, 0
    %v349 = vsel %vm135, %v280, 0
    %v352 = vsel %vm135, %v283, 0
    %354 = vmatpush.msra.mxu0 %v315
    %355 = vmatpush.msra.mxu0 %v313
    %356 = vmatpush.msra.mxu0 %v311
    %357 = vmatpush.msra.mxu0 %v309
    %358 = vmatpush.msra.mxu0 %v307
    %359 = vmatpush.msra.mxu0 %v305
    %360 = vmatpush.msra.mxu0 %v303
    %361 = vmatpush.msra.mxu0 %v301
    %362 = vmatpush.msra.mxu0 %v299
    %363 = vmatpush.msra.mxu0 %v297
    %364 = vmatpush.msra.mxu0 %v295
    %365 = vmatpush.msra.mxu0 %v293
    %366 = vmatpush.msra.mxu0 %v291
    %367 = vmatpush.msra.mxu0 %v289
    %368 = vmatpush.msra.mxu0 %v287
    %369 = vmatpush.msra.mxu0 %v285
    %370 = vmatmul.f32.gmra.mxu0 %v239
    %v371 = vpop.f32.mrf.mxu0
    %v372 = vadd.f32 %v335, %v371
    %373 = vmatmul.f32.gmra.mxu0 %v242
    %v374 = vpop.f32.mrf.mxu0
    %v375 = vadd.f32 %v335, %v374
    %376 = vmatmul.f32.gmra.mxu0 %v245
    %v377 = vpop.f32.mrf.mxu0
    %v378 = vadd.f32 %v335, %v377
    %379 = vmatmul.f32.gmra.mxu0 %v248
    %v380 = vpop.f32.mrf.mxu0
    %v381 = vadd.f32 %v335, %v380
    %382 = vmatmul.f32.gmra.mxu0 %v251
    %v383 = vpop.f32.mrf.mxu0
    %v384 = vadd.f32 %v335, %v383
    %385 = vdwg.mxu0
    %386 = vmatpush.msra.mxu0 0.0
    %387 = vmatpush.msra.mxu0 0.0
    %388 = vmatpush.msra.mxu0 0.0
    %389 = vmatpush.msra.mxu0 0.0
    %390 = vmatpush.msra.mxu0 0.0
    %391 = vmatpush.msra.mxu0 0.0
    %392 = vmatpush.msra.mxu0 0.0
    %393 = vmatpush.msra.mxu0 0.0
    %394 = vmatpush.msra.mxu0 %v331
    %395 = vmatpush.msra.mxu0 %v329
    %396 = vmatpush.msra.mxu0 %v327
    %397 = vmatpush.msra.mxu0 %v325
    %398 = vmatpush.msra.mxu0 %v323
    %399 = vmatpush.msra.mxu0 %v321
    %400 = vmatpush.msra.mxu0 %v319
    %401 = vmatpush.msra.mxu0 %v317
    %402 = vmatmul.f32.gmra.mxu0 %v340
    %v403 = vpop.f32.mrf.mxu0
    %v404 = vadd.f32 %v372, %v403
    %405 = vmatmul.f32.gmra.mxu0 %v343
    %v406 = vpop.f32.mrf.mxu0
    %v407 = vadd.f32 %v375, %v406
    %408 = vmatmul.f32.gmra.mxu0 %v346
    %v409 = vpop.f32.mrf.mxu0
    %v410 = vadd.f32 %v378, %v409
    %411 = vmatmul.f32.gmra.mxu0 %v349
    %v412 = vpop.f32.mrf.mxu0
    %v413 = vadd.f32 %v381, %v412
    %414 = vmatmul.f32.gmra.mxu0 %v352
    %v415 = vpop.f32.mrf.mxu0
    %v416 = vadd.f32 %v384, %v415
    %417 = vdwg.mxu0
    %418 = vmatpush.msra.mxu0 %v316
    %419 = vmatpush.msra.mxu0 %v314
    %420 = vmatpush.msra.mxu0 %v312
    %421 = vmatpush.msra.mxu0 %v310
    %422 = vmatpush.msra.mxu0 %v308
    %423 = vmatpush.msra.mxu0 %v306
    %424 = vmatpush.msra.mxu0 %v304
    %425 = vmatpush.msra.mxu0 %v302
    %426 = vmatpush.msra.mxu0 %v300
    %427 = vmatpush.msra.mxu0 %v298
    %428 = vmatpush.msra.mxu0 %v296
    %429 = vmatpush.msra.mxu0 %v294
    %430 = vmatpush.msra.mxu0 %v292
    %431 = vmatpush.msra.mxu0 %v290
    %432 = vmatpush.msra.mxu0 %v288
    %433 = vmatpush.msra.mxu0 %v286
    %434 = vmatmul.f32.gmra.mxu0 %v239
    %v435 = vpop.f32.mrf.mxu0
    %v436 = vadd.f32 %v336, %v435
    %437 = vmatmul.f32.gmra.mxu0 %v242
    %v438 = vpop.f32.mrf.mxu0
    %v439 = vadd.f32 %v336, %v438
    %440 = vmatmul.f32.gmra.mxu0 %v245
    %v441 = vpop.f32.mrf.mxu0
    %v442 = vadd.f32 %v336, %v441
    %443 = vmatmul.f32.gmra.mxu0 %v248
    %v444 = vpop.f32.mrf.mxu0
    %v445 = vadd.f32 %v336, %v444
    %446 = vmatmul.f32.gmra.mxu0 %v251
    %v447 = vpop.f32.mrf.mxu0
    %v448 = vadd.f32 %v336, %v447
    %449 = vdwg.mxu0
    %450 = vmatpush.msra.mxu0 0.0
    %451 = vmatpush.msra.mxu0 0.0
    %452 = vmatpush.msra.mxu0 0.0
    %453 = vmatpush.msra.mxu0 0.0
    %454 = vmatpush.msra.mxu0 0.0
    %455 = vmatpush.msra.mxu0 0.0
    %456 = vmatpush.msra.mxu0 0.0
    %457 = vmatpush.msra.mxu0 0.0
    %458 = vmatpush.msra.mxu0 %v332
    %459 = vmatpush.msra.mxu0 %v330
    %460 = vmatpush.msra.mxu0 %v328
    %461 = vmatpush.msra.mxu0 %v326
    %462 = vmatpush.msra.mxu0 %v324
    %463 = vmatpush.msra.mxu0 %v322
    %464 = vmatpush.msra.mxu0 %v320
    %465 = vmatpush.msra.mxu0 %v318
    %466 = vmatmul.f32.gmra.mxu0 %v340
    %v467 = vpop.f32.mrf.mxu0
    %v468 = vadd.f32 %v436, %v467
    %469 = vmatmul.f32.gmra.mxu0 %v343
    %v470 = vpop.f32.mrf.mxu0
    %v471 = vadd.f32 %v439, %v470
    %472 = vmatmul.f32.gmra.mxu0 %v346
    %v473 = vpop.f32.mrf.mxu0
    %v474 = vadd.f32 %v442, %v473
    %475 = vmatmul.f32.gmra.mxu0 %v349
    %v476 = vpop.f32.mrf.mxu0
    %v477 = vadd.f32 %v445, %v476
    %478 = vmatmul.f32.gmra.mxu0 %v352
    %v479 = vpop.f32.mrf.mxu0
    %v480 = vadd.f32 %v448, %v479
    %481 = vdwg.mxu0
    %482 = vst [vmem:[#allocation2] sm:$0xff] %v404
    %483 = vst [vmem:[#allocation2 + $0x8] sm:$0xff] %v468
    %484 = vst [vmem:[#allocation2 + $0x10] sm:$0xff] %v407
    %485 = vst [vmem:[#allocation2 + $0x18] sm:$0xff] %v471
    %486 = vst [vmem:[#allocation2 + $0x20] sm:$0xff] %v410
    %487 = vst [vmem:[#allocation2 + $0x28] sm:$0xff] %v474
    %488 = vst [vmem:[#allocation2 + $0x30] sm:$0xff] %v413
    %489 = vst [vmem:[#allocation2 + $0x38] sm:$0xff] %v477
    %490 = vst [vmem:[#allocation2 + $0x40] sm:$0xff] %v416
    %491 = vst [vmem:[#allocation2 + $0x48] sm:$0xff] %v480
    // Predicated region
    $region46: #{tpu_custom_call.1} parent=1 // pred_check
      _
    $region47: #{tpu_custom_call.1} parent=1 // pred_check_branch
      %493 = sbr.rel (0) target = $region49
    $region48: #{tpu_custom_call.1} parent=1 // pred_region
      %495 = vsyncadd [#allocation3], 0
      %s496 = sshll.u32 [#allocation2], 4
      %s497 = int_to_ptr.vmem [resolvable:$true] %s496
      %s498 = sshll.u32 %s11, 4
      %s499 = int_to_ptr.hbm [resolvable:$true] %s498
      %504 = dma.vmem_to_hbm [thread:$0]  %s497, 1280, %s499, [#allocation3], 256, 256, 16
    $region49: #{tpu_custom_call.1} parent=1 // pred_fallthru
      _
    // Predicated region
    $region50: #{tpu_custom_call.1} parent=1 // pred_check
      _
    $region51: #{tpu_custom_call.1} parent=1 // pred_check_branch
      %506 = sbr.rel (0) target = $region53
    $region52: #{tpu_custom_call.1} parent=1 // pred_region
      %508 = dma.done [#allocation3], 1280
    $region53: #{tpu_custom_call.1} parent=1 // pred_fallthru
      _
    %509 = vsyncpa [#allocation3], 1

</llo_original>
